<compile_context>
chip_gen: v6e
topology: v6e:2x2x1
jax: 0.10.0
libtpu: 0.0.40
codegen_flags: <defaults>
</compile_context>

<pallas_src>
import numpy as np
import jax
import jax.numpy as jnp
from jax.experimental import pallas as pl
from jax.experimental.pallas import tpu as pltpu

NEG = np.float32(-1e30)  # pad bias for unused fc2 output lanes (exp() -> 0, never the max)


# ----------------------------------------------------------------------------- kernel
def cnn_kernel(x_ref, w1_ref, w_ref, out_ref):
    # x_ref  : (TB, 128) bf16  lanes [0:100] = x.reshape(B,100) (NCHW), [100:127] = 0, lane 127 = 1
    # w1_ref : (128, 512) bf16 conv1 folded at the 4 pool offsets (4 blocks of 128 lanes)
    # w_ref  : (3, 128, 128) bf16 conv2 / fc1 / fc2 blocks (biases folded via lane 127)
    # out_ref: (TB, 128) f32  cols [0:40] = log_softmax(fc2(x)), cols [40:128] = junk (~ -1e30)
    x = x_ref[...]                                                    # (TB, 128) bf16

    # conv1 + ReLU at the four max-pool window offsets, one fused MXU dot.
    h = jnp.maximum(
        jnp.dot(x, w1_ref[...], preferred_element_type=jnp.float32), 0.0)   # (TB, 512) f32

    # max_pool2d k=(2,2), s=1: max over the 4 offset blocks (vreg-aligned 128-lane slices).
    pooled = jnp.maximum(jnp.maximum(h[:, 0:128], h[:, 128:256]),
                         jnp.maximum(h[:, 256:384], h[:, 384:512]))          # (TB, 128) f32

    # conv2 (10->20, k=2) + ReLU as one block matmul (torch .view(B,-1) lane order).
    h2 = jnp.maximum(
        jnp.dot(pooled.astype(jnp.bfloat16), w_ref[0],
                preferred_element_type=jnp.float32), 0.0)                    # (TB, 128) f32

    # fc1 (80->60) + ReLU
    h3 = jnp.maximum(
        jnp.dot(h2.astype(jnp.bfloat16), w_ref[1],
                preferred_element_type=jnp.float32), 0.0)                    # (TB, 128) f32

    # fc2 (60->40), zero-padded to 128 lanes (pad bias ~ -1e30 via the constant-1 lane)
    z = jnp.dot(h3.astype(jnp.bfloat16), w_ref[2],
                preferred_element_type=jnp.float32)                          # (TB, 128) f32

    # log_softmax over dim 1 (pad lanes underflow to exp()=0 and never win the max)
    m = jnp.max(z, axis=1, keepdims=True)
    lse = m + jnp.log(jnp.sum(jnp.exp(z - m), axis=1, keepdims=True))
    out_ref[...] = z - lse                                                   # single unmasked store


# ----------------------------------------------------------------------------- tiling
def _round_up(n, m):
    return ((n + m - 1) // m) * m


def _choose_tile(batch):
    """Batch tile (multiple of 8, capped at 1024) and the padded batch size."""
    tile = min(1024, _round_up(batch, 8))
    # v7x has 2 TensorCores: prefer >=2 grid steps so the "parallel" axis can shard.
    if _round_up(batch, tile) // tile == 1 and tile >= 16 and (tile // 2) % 8 == 0:
        tile //= 2
    padded = _round_up(batch, tile)
    return tile, padded


# ----------------------------------------------------------------------------- wrapper
def cnn_forward(x, w1_all, w_rest):
    assert x.ndim == 4 and x.shape[1:] == (4, 5, 5), "expected NCHW input (B, 4, 5, 5)"
    batch = x.shape[0]
    x_flat = x.reshape(batch, 100).astype(jnp.float32)
    x_pad = jnp.concatenate(
        [x_flat,
         jnp.zeros((batch, 27), jnp.float32),
         jnp.ones((batch, 1), jnp.float32)],        # constant-1 lane 127 carries the biases
        axis=1).astype(jnp.bfloat16)                # (B, 128) bf16: half-width activation DMA

    tb, padded = _choose_tile(batch)
    if padded != batch:
        x_pad = jnp.pad(x_pad, ((0, padded - batch), (0, 0)))

    out = pl.pallas_call(
        cnn_kernel,
        out_shape=jax.ShapeDtypeStruct((padded, 128), jnp.float32),
        grid=(padded // tb,),
        in_specs=[
            pl.BlockSpec((tb, 128), lambda i: (i, 0)),          # activations: batch-tiled
            pl.BlockSpec((128, 512), lambda i: (0, 0)),         # conv1 weights: resident
            pl.BlockSpec((3, 128, 128), lambda i: (0, 0, 0)),   # conv2/fc1/fc2: resident
        ],
        out_specs=pl.BlockSpec((tb, 128), lambda i: (i, 0)),
        compiler_params=pltpu.CompilerParams(
            dimension_semantics=("parallel",)),     # batch tiles shard across TCs on v7x
    )(x_pad, w1_all, w_rest)
    return out[:batch, :40]


# ----------------------------------------------------------------------------- params
def init_params(key):
    """Deterministic torch-style init U(-1/sqrt(fan_in), 1/sqrt(fan_in)), torch layouts."""
    def u(k, shape, fan_in):
        bound = 1.0 / np.sqrt(fan_in)
        return jax.random.uniform(k, shape, jnp.float32, -bound, bound)

    ks = jax.random.split(key, 8)
    return {
        "conv1_w": u(ks[0], (10, 4, 2, 2), 4 * 2 * 2),
        "conv1_b": u(ks[1], (10,), 4 * 2 * 2),
        "conv2_w": u(ks[2], (20, 10, 2, 2), 10 * 2 * 2),
        "conv2_b": u(ks[3], (20,), 10 * 2 * 2),
        "fc1_w": u(ks[4], (60, 80), 80),
        "fc1_b": u(ks[5], (60,), 80),
        "fc2_w": u(ks[6], (40, 60), 60),
        "fc2_b": u(ks[7], (40,), 60),
    }


def pack_params(P):
    """Fold im2col, the max-pool window offsets and ALL biases into two bf16 weight stacks."""
    c1w = np.asarray(P["conv1_w"], np.float32); c1b = np.asarray(P["conv1_b"], np.float32)
    c2w = np.asarray(P["conv2_w"], np.float32); c2b = np.asarray(P["conv2_b"], np.float32)
    f1w = np.asarray(P["fc1_w"], np.float32);   f1b = np.asarray(P["fc1_b"], np.float32)
    f2w = np.asarray(P["fc2_w"], np.float32);   f2b = np.asarray(P["fc2_b"], np.float32)

    # conv1 evaluated at the 4 pool offsets; offset o occupies lanes [o*128, o*128+128).
    # Within an offset block, lane (r2*3 + c2)*10 + cout = conv1 out at spatial (r2+dr, c2+dc).
    W1 = np.zeros((128, 512), np.float32)
    for o, (dr, dc) in enumerate([(0, 0), (0, 1), (1, 0), (1, 1)]):
        base = o * 128
        for r2 in range(3):
            for c2 in range(3):
                lane = base + (r2 * 3 + c2) * 10
                R, C = r2 + dr, c2 + dc
                for cin in range(4):
                    for kr in range(2):
                        for kc in range(2):
                            row = cin * 25 + (R + kr) * 5 + (C + kc)
                            W1[row, lane:lane + 10] = c1w[:, cin, kr, kc]
                W1[127, lane:lane + 10] = c1b            # bias via constant-1 lane
        W1[127, base + 127] = 1.0                        # keep the constant-1 lane alive

    WR = np.zeros((3, 128, 128), np.float32)

    # conv2: pooled lane (pos)*10 + cin -> output lane cout*4 + (ro*2+co) (torch flatten order)
    for ro in range(2):
        for co in range(2):
            out_lane = ro * 2 + co
            for kr in range(2):
                for kc in range(2):
                    pos = (ro + kr) * 3 + (co + kc)
                    for cin in range(10):
                        WR[0, pos * 10 + cin, out_lane:80:4] = c2w[:, cin, kr, kc]
    WR[0, 127, 0:80] = np.repeat(c2b, 4)
    WR[0, 127, 127] = 1.0

    # fc1
    WR[1, 0:80, 0:60] = f1w.T
    WR[1, 127, 0:60] = f1b
    WR[1, 127, 127] = 1.0

    # fc2 padded to 128 output lanes; pad columns get -1e30 through the constant-1 lane
    WR[2, 0:60, 0:40] = f2w.T
    WR[2, 127, 0:40] = f2b
    WR[2, 127, 40:128] = NEG

    return jnp.asarray(W1, jnp.bfloat16), jnp.asarray(WR, jnp.bfloat16)


# ----------------------------------------------------------------------------- reference
def reference_forward(x, P):
    """Pure numpy re-implementation of the PyTorch CNN.forward (for verification)."""
    x = np.asarray(x, np.float32)
    batch = x.shape[0]
    w1, b1 = np.asarray(P["conv1_w"]), np.asarray(P["conv1_b"])
    out1 = np.zeros((batch, 10, 4, 4), np.float32)
    for r in range(4):
        for c in range(4):
            patch = x[:, :, r:r + 2, c:c + 2].reshape(batch, -1)
            out1[:, :, r, c] = patch @ w1.reshape(10, -1).T + b1
    out1 = np.maximum(out1, 0)
    pooled = np.zeros((batch, 10, 3, 3), np.float32)
    for r in range(3):
        for c in range(3):
            pooled[:, :, r, c] = out1[:, :, r:r + 2, c:c + 2].max(axis=(2, 3))
    w2, b2 = np.asarray(P["conv2_w"]), np.asarray(P["conv2_b"])
    out2 = np.zeros((batch, 20, 2, 2), np.float32)
    for r in range(2):
        for c in range(2):
            patch = pooled[:, :, r:r + 2, c:c + 2].reshape(batch, -1)
            out2[:, :, r, c] = patch @ w2.reshape(20, -1).T + b2
    out2 = np.maximum(out2, 0)
    flat = out2.reshape(batch, -1)
    h = np.maximum(flat @ np.asarray(P["fc1_w"]).T + np.asarray(P["fc1_b"]), 0)
    z = h @ np.asarray(P["fc2_w"]).T + np.asarray(P["fc2_b"])
    m = z.max(axis=1, keepdims=True)
    return z - (m + np.log(np.exp(z - m).sum(axis=1, keepdims=True)))


# ----------------------------------------------------------------------------- main
if __name__ == "__main__":
    key = jax.random.PRNGKey(0)
    k_x, k_p = jax.random.split(key)

    B = 8  # conv1(4->10,k2) -> pool(2,s1) -> conv2(10->20,k2) -> flatten(80) needs 5x5 input
    x = jax.random.normal(k_x, (B, 4, 5, 5), jnp.float32)

    params = init_params(k_p)
    w1_all, w_rest = pack_params(params)

    out = jax.block_until_ready(cnn_forward(x, w1_all, w_rest))

    ref = reference_forward(np.asarray(x), params)
    np.testing.assert_allclose(np.asarray(out), ref, rtol=2e-2, atol=2e-2)  # bf16 operands

    print("KERNEL_OK")
</pallas_src>

<mosaic_0001>
module attributes {stable_mosaic.version = 11 : i64} {
  func.func @cnn_kernel(%arg0: i32, %arg1: memref<8x128xbf16, #tpu.memory_space<vmem>>, %arg2: memref<128x512xbf16, #tpu.memory_space<vmem>>, %arg3: memref<3x128x128xbf16, #tpu.memory_space<vmem>>, %arg4: memref<8x128xf32, #tpu.memory_space<vmem>>) attributes {dimension_semantics = [#tpu.dimension_semantics<parallel>], iteration_bounds = array<i64: 1>, scalar_prefetch = 0 : i64, scratch_operands = 0 : i64, tpu.core_type = #tpu.core_type<tc>, window_params = [{transform_indices = @transform_0, window_bounds = array<i64: 8, 128>}, {pipeline_mode = #tpu.pipeline_mode<synchronous>, transform_indices = @transform_1, window_bounds = array<i64: 128, 512>}, {pipeline_mode = #tpu.pipeline_mode<synchronous>, transform_indices = @transform_2, window_bounds = array<i64: 3, 128, 128>}, {transform_indices = @transform_3, window_bounds = array<i64: 8, 128>}]} {
    %c0 = arith.constant 0 : index
    %c0_0 = arith.constant 0 : index
    %0 = vector.load %arg1[%c0, %c0_0] : memref<8x128xbf16, #tpu.memory_space<vmem>>, vector<8x128xbf16>
    %c0_1 = arith.constant 0 : index
    %c0_2 = arith.constant 0 : index
    %1 = vector.load %arg2[%c0_1, %c0_2] : memref<128x512xbf16, #tpu.memory_space<vmem>>, vector<128x512xbf16>
    %cst = arith.constant dense<0.000000e+00> : vector<8x512xf32>
    %2 = tpu.matmul %0, %1, %cst {dimension_numbers = #tpu.dot_dimension_numbers<[1], [0], [0], [1], [0, 0, 1, 1], [], []>} : vector<8x128xbf16>, vector<128x512xbf16>, vector<8x512xf32> -> vector<8x512xf32>
    %cst_3 = arith.constant 0.000000e+00 : f32
    %3 = vector.broadcast %cst_3 : f32 to vector<8x512xf32>
    %4 = arith.maximumf %2, %3 : vector<8x512xf32>
    %5 = vector.extract_strided_slice %4 {offsets = [0, 0], sizes = [8, 128], strides = [1, 1]} : vector<8x512xf32> to vector<8x128xf32>
    %6 = vector.extract_strided_slice %4 {offsets = [0, 128], sizes = [8, 128], strides = [1, 1]} : vector<8x512xf32> to vector<8x128xf32>
    %7 = arith.maximumf %5, %6 : vector<8x128xf32>
    %8 = vector.extract_strided_slice %4 {offsets = [0, 256], sizes = [8, 128], strides = [1, 1]} : vector<8x512xf32> to vector<8x128xf32>
    %9 = vector.extract_strided_slice %4 {offsets = [0, 384], sizes = [8, 128], strides = [1, 1]} : vector<8x512xf32> to vector<8x128xf32>
    %10 = arith.maximumf %8, %9 : vector<8x128xf32>
    %11 = arith.maximumf %7, %10 : vector<8x128xf32>
    %12 = arith.truncf %11 : vector<8x128xf32> to vector<8x128xbf16>
    %c0_4 = arith.constant 0 : index
    %c0_5 = arith.constant 0 : index
    %c0_6 = arith.constant 0 : index
    %13 = vector.load %arg3[%c0_4, %c0_5, %c0_6] : memref<3x128x128xbf16, #tpu.memory_space<vmem>>, vector<1x128x128xbf16>
    %14 = vector.shape_cast %13 : vector<1x128x128xbf16> to vector<128x128xbf16>
    %cst_7 = arith.constant dense<0.000000e+00> : vector<8x128xf32>
    %15 = tpu.matmul %12, %14, %cst_7 {dimension_numbers = #tpu.dot_dimension_numbers<[1], [0], [0], [1], [0, 0, 1, 1], [], []>} : vector<8x128xbf16>, vector<128x128xbf16>, vector<8x128xf32> -> vector<8x128xf32>
    %cst_8 = arith.constant 0.000000e+00 : f32
    %16 = vector.broadcast %cst_8 : f32 to vector<8x128xf32>
    %17 = arith.maximumf %15, %16 : vector<8x128xf32>
    %18 = arith.truncf %17 : vector<8x128xf32> to vector<8x128xbf16>
    %c1 = arith.constant 1 : index
    %c0_9 = arith.constant 0 : index
    %c0_10 = arith.constant 0 : index
    %19 = vector.load %arg3[%c1, %c0_9, %c0_10] : memref<3x128x128xbf16, #tpu.memory_space<vmem>>, vector<1x128x128xbf16>
    %20 = vector.shape_cast %19 : vector<1x128x128xbf16> to vector<128x128xbf16>
    %cst_11 = arith.constant dense<0.000000e+00> : vector<8x128xf32>
    %21 = tpu.matmul %18, %20, %cst_11 {dimension_numbers = #tpu.dot_dimension_numbers<[1], [0], [0], [1], [0, 0, 1, 1], [], []>} : vector<8x128xbf16>, vector<128x128xbf16>, vector<8x128xf32> -> vector<8x128xf32>
    %cst_12 = arith.constant 0.000000e+00 : f32
    %22 = vector.broadcast %cst_12 : f32 to vector<8x128xf32>
    %23 = arith.maximumf %21, %22 : vector<8x128xf32>
    %24 = arith.truncf %23 : vector<8x128xf32> to vector<8x128xbf16>
    %c2 = arith.constant 2 : index
    %c0_13 = arith.constant 0 : index
    %c0_14 = arith.constant 0 : index
    %25 = vector.load %arg3[%c2, %c0_13, %c0_14] : memref<3x128x128xbf16, #tpu.memory_space<vmem>>, vector<1x128x128xbf16>
    %26 = vector.shape_cast %25 : vector<1x128x128xbf16> to vector<128x128xbf16>
    %cst_15 = arith.constant dense<0.000000e+00> : vector<8x128xf32>
    %27 = tpu.matmul %24, %26, %cst_15 {dimension_numbers = #tpu.dot_dimension_numbers<[1], [0], [0], [1], [0, 0, 1, 1], [], []>} : vector<8x128xbf16>, vector<128x128xbf16>, vector<8x128xf32> -> vector<8x128xf32>
    %cst_16 = arith.constant dense<0xFF800000> : vector<8xf32>
    %28 = vector.multi_reduction <maximumf>, %27, %cst_16 [1] : vector<8x128xf32> to vector<8xf32>
    %29 = vector.shape_cast %28 : vector<8xf32> to vector<8x1xf32>
    %30 = vector.broadcast %29 : vector<8x1xf32> to vector<8x128xf32>
    %31 = arith.subf %27, %30 : vector<8x128xf32>
    %32 = math.exp %31 : vector<8x128xf32>
    %cst_17 = arith.constant dense<0.000000e+00> : vector<8xf32>
    %33 = vector.multi_reduction <add>, %32, %cst_17 [1] : vector<8x128xf32> to vector<8xf32>
    %34 = vector.shape_cast %33 : vector<8xf32> to vector<8x1xf32>
    %35 = math.log %34 : vector<8x1xf32>
    %36 = arith.addf %29, %35 : vector<8x1xf32>
    %37 = vector.broadcast %36 : vector<8x1xf32> to vector<8x128xf32>
    %38 = arith.subf %27, %37 : vector<8x128xf32>
    %c0_18 = arith.constant 0 : index
    %c0_19 = arith.constant 0 : index
    %39 = vector.load %arg4[%c0_18, %c0_19] : memref<8x128xf32, #tpu.memory_space<vmem>>, vector<8x128xf32>
    tpu.vector_store %arg4[%c0_18, %c0_19], %38 {strides = array<i32>} : memref<8x128xf32, #tpu.memory_space<vmem>>, vector<8x128xf32>,
    return
  }
  func.func @transform_0(%arg0: i32) -> (i32, i32) {
    %c0_i32 = arith.constant 0 : i32
    %c0_i32_0 = arith.constant 0 : i32
    return %arg0, %c0_i32 : i32, i32
  }
  func.func @transform_1(%arg0: i32) -> (i32, i32) {
    %c0_i32 = arith.constant 0 : i32
    %c0_i32_0 = arith.constant 0 : i32
    %c0_i32_1 = arith.constant 0 : i32
    return %c0_i32, %c0_i32_0 : i32, i32
  }
  func.func @transform_2(%arg0: i32) -> (i32, i32, i32) {
    %c0_i32 = arith.constant 0 : i32
    %c0_i32_0 = arith.constant 0 : i32
    %c0_i32_1 = arith.constant 0 : i32
    %c0_i32_2 = arith.constant 0 : i32
    return %c0_i32, %c0_i32_0, %c0_i32_1 : i32, i32, i32
  }
  func.func @transform_3(%arg0: i32) -> (i32, i32) {
    %c0_i32 = arith.constant 0 : i32
    %c0_i32_0 = arith.constant 0 : i32
    return %arg0, %c0_i32 : i32, i32
  }
}

</mosaic_0001>

<llo_original>
// kernel: tpu_custom_call.1
$region0: #{tpu_custom_call.1}
  #allocation0 [shape = 'u32[]', space=smem, size = 0x4, offset = 0x4, fixed_abs, tag = 'smem constant byte address 0x4 - core index']
  #allocation1 [shape = 'u32[144,128]{1,0:T(1,128)}', space=vmem, size = 0x12000, scoped, tag = 'internal scratch']
  %s0 = inlined_call_operand.hbm [shape: bf16[8,128], index: 0, kind: input, shape index: {}]
  %s1 = inlined_call_operand.hbm [shape: bf16[128,512], index: 1, kind: input, shape index: {}]
  %s2 = inlined_call_operand.hbm [shape: bf16[3,128,128], index: 2, kind: input, shape index: {}]
  %s3 = inlined_call_operand.hbm [shape: f32[8,128], index: 3, kind: output, shape index: {}]
  %s4 = sld [smem:[#allocation0]]
  $region34: #{tpu_custom_call.1} parent=0
    _
  %s6 = ssub.s32 1, %s4
  %s7 = scalar_select 0, %s6, %s4
  $region1: #{tpu_custom_call.1} parent=0
    #allocation2 [shape = 'u8[2048]{0}', space=vmem, size = 0x800, scoped, tag = 'input window, operand 0, single buffered']
    #allocation3 [shape = 's32[1]{0}', space=sflag, size = 0x4, scoped, tag = 'scoped memory for tpu_custom_call.1']
    #allocation4 [shape = 's32[1]{0}', space=sflag, size = 0x4, scoped, tag = 'scoped memory for tpu_custom_call.1']
    #allocation5 [shape = 'u8[131072]{0}', space=vmem, size = 0x20000, scoped, tag = 'input window, operand 1, single buffered']
    #allocation6 [shape = 's32[1]{0}', space=sflag, size = 0x4, scoped, tag = 'scoped memory for tpu_custom_call.1']
    #allocation7 [shape = 'u8[98304]{0}', space=vmem, size = 0x18000, scoped, tag = 'input window, operand 2, single buffered']
    #allocation8 [shape = 'u8[4096]{0}', space=vmem, size = 0x1000, scoped, tag = 'output window, operand 0, single buffered']
    %8 = vsyncpa [#allocation3], 0
    %9 = vsyncpa [#allocation6], 0
    %10 = vsyncpa [#allocation4], 0
    // Predicated region
    $region2: #{tpu_custom_call.1} parent=1 // pred_check
      _
    $region3: #{tpu_custom_call.1} parent=1 // pred_check_branch
      %12 = sbr.rel (0) target = $region5
    $region4: #{tpu_custom_call.1} parent=1 // pred_region
      %s14 = ssub.s32 64, 64
      %15 = vsyncadd [#allocation3], %s14
      %s17 = sshll.u32 [#allocation2], 4
      %s18 = int_to_ptr.vmem [resolvable:$true] %s17
      %20 = dma.hbm_to_vmem [thread:$0]  %s0, 64, %s18, [#allocation3]
    $region5: #{tpu_custom_call.1} parent=1 // pred_fallthru
      _
    // Predicated region
    $region6: #{tpu_custom_call.1} parent=1 // pred_check
      _
    $region7: #{tpu_custom_call.1} parent=1 // pred_check_branch
      %22 = sbr.rel (0) target = $region9
    $region8: #{tpu_custom_call.1} parent=1 // pred_region
      %s24 = ssub.s32 4096, 4096
      %25 = vsyncadd [#allocation6], %s24
      %s26 = sshll.u32 [#allocation5], 4
      %s27 = int_to_ptr.vmem [resolvable:$true] %s26
      %32 = dma.hbm_to_vmem [thread:$0]  %s1, 4096, %s27, [#allocation6], 256, 256, 16
    $region9: #{tpu_custom_call.1} parent=1 // pred_fallthru
      _
    // Predicated region
    $region10: #{tpu_custom_call.1} parent=1 // pred_check
      _
    $region11: #{tpu_custom_call.1} parent=1 // pred_check_branch
      %34 = sbr.rel (0) target = $region13
    $region12: #{tpu_custom_call.1} parent=1 // pred_region
      %s36 = ssub.s32 3072, 3072
      %37 = vsyncadd [#allocation6], %s36
      %s38 = sshll.u32 [#allocation7], 4
      %s39 = int_to_ptr.vmem [resolvable:$true] %s38
      %44 = dma.hbm_to_vmem [thread:$0]  %s2, 3072, %s39, [#allocation6], 64, 64, 4
    $region13: #{tpu_custom_call.1} parent=1 // pred_fallthru
      _
    // Predicated region
    $region14: #{tpu_custom_call.1} parent=1 // pred_check
      _
    $region15: #{tpu_custom_call.1} parent=1 // pred_check_branch
      %46 = sbr.rel (0) target = $region17
    $region16: #{tpu_custom_call.1} parent=1 // pred_region
      %47 = dma.done [#allocation3], 64
    $region17: #{tpu_custom_call.1} parent=1 // pred_fallthru
      _
    // Predicated region
    $region18: #{tpu_custom_call.1} parent=1 // pred_check
      _
    $region19: #{tpu_custom_call.1} parent=1 // pred_check_branch
      %49 = sbr.rel (0) target = $region21
    $region20: #{tpu_custom_call.1} parent=1 // pred_region
      %50 = dma.done [#allocation6], 4096
    $region21: #{tpu_custom_call.1} parent=1 // pred_fallthru
      _
    // Predicated region
    $region22: #{tpu_custom_call.1} parent=1 // pred_check
      _
    $region23: #{tpu_custom_call.1} parent=1 // pred_check_branch
      %52 = sbr.rel (0) target = $region25
    $region24: #{tpu_custom_call.1} parent=1 // pred_region
      %53 = dma.done [#allocation6], 3072
    $region25: #{tpu_custom_call.1} parent=1 // pred_fallthru
      _
    %v55 = vld [vmem:[#allocation2] sm:$0xf]
    %v56 = vld [vmem:[#allocation5] sm:$0xff]
    %v57 = vld [vmem:[#allocation5 + $0x8] sm:$0xff]
    %v58 = vld [vmem:[#allocation5 + $0x10] sm:$0xff]
    %v59 = vld [vmem:[#allocation5 + $0x18] sm:$0xff]
    %v60 = vld [vmem:[#allocation5 + $0x20] sm:$0xff]
    %v61 = vld [vmem:[#allocation5 + $0x28] sm:$0xff]
    %v62 = vld [vmem:[#allocation5 + $0x30] sm:$0xff]
    %v63 = vld [vmem:[#allocation5 + $0x38] sm:$0xff]
    %v64 = vld [vmem:[#allocation5 + $0x40] sm:$0xff]
    %v65 = vld [vmem:[#allocation5 + $0x48] sm:$0xff]
    %v66 = vld [vmem:[#allocation5 + $0x50] sm:$0xff]
    %v67 = vld [vmem:[#allocation5 + $0x58] sm:$0xff]
    %v68 = vld [vmem:[#allocation5 + $0x60] sm:$0xff]
    %v69 = vld [vmem:[#allocation5 + $0x68] sm:$0xff]
    %v70 = vld [vmem:[#allocation5 + $0x70] sm:$0xff]
    %v71 = vld [vmem:[#allocation5 + $0x78] sm:$0xff]
    %v72 = vld [vmem:[#allocation5 + $0x80] sm:$0xff]
    %v73 = vld [vmem:[#allocation5 + $0x88] sm:$0xff]
    %v74 = vld [vmem:[#allocation5 + $0x90] sm:$0xff]
    %v75 = vld [vmem:[#allocation5 + $0x98] sm:$0xff]
    %v76 = vld [vmem:[#allocation5 + $0xa0] sm:$0xff]
    %v77 = vld [vmem:[#allocation5 + $0xa8] sm:$0xff]
    %v78 = vld [vmem:[#allocation5 + $0xb0] sm:$0xff]
    %v79 = vld [vmem:[#allocation5 + $0xb8] sm:$0xff]
    %v80 = vld [vmem:[#allocation5 + $0xc0] sm:$0xff]
    %v81 = vld [vmem:[#allocation5 + $0xc8] sm:$0xff]
    %v82 = vld [vmem:[#allocation5 + $0xd0] sm:$0xff]
    %v83 = vld [vmem:[#allocation5 + $0xd8] sm:$0xff]
    %v84 = vld [vmem:[#allocation5 + $0xe0] sm:$0xff]
    %v85 = vld [vmem:[#allocation5 + $0xe8] sm:$0xff]
    %v86 = vld [vmem:[#allocation5 + $0xf0] sm:$0xff]
    %v87 = vld [vmem:[#allocation5 + $0xf8] sm:$0xff]
    %v120 = vunpack.c.l.b16 %v56
    %v121 = vunpack.c.h.b16 %v56
    %v122 = vunpack.c.l.b16 %v57
    %v123 = vunpack.c.h.b16 %v57
    %v124 = vunpack.c.l.b16 %v58
    %v125 = vunpack.c.h.b16 %v58
    %v126 = vunpack.c.l.b16 %v59
    %v127 = vunpack.c.h.b16 %v59
    %v128 = vunpack.c.l.b16 %v60
    %v129 = vunpack.c.h.b16 %v60
    %v130 = vunpack.c.l.b16 %v61
    %v131 = vunpack.c.h.b16 %v61
    %v132 = vunpack.c.l.b16 %v62
    %v133 = vunpack.c.h.b16 %v62
    %v134 = vunpack.c.l.b16 %v63
    %v135 = vunpack.c.h.b16 %v63
    %v136 = vunpack.c.l.b16 %v64
    %v137 = vunpack.c.h.b16 %v64
    %v138 = vunpack.c.l.b16 %v65
    %v139 = vunpack.c.h.b16 %v65
    %v140 = vunpack.c.l.b16 %v66
    %v141 = vunpack.c.h.b16 %v66
    %v142 = vunpack.c.l.b16 %v67
    %v143 = vunpack.c.h.b16 %v67
    %v144 = vunpack.c.l.b16 %v68
    %v145 = vunpack.c.h.b16 %v68
    %v146 = vunpack.c.l.b16 %v69
    %v147 = vunpack.c.h.b16 %v69
    %v148 = vunpack.c.l.b16 %v70
    %v149 = vunpack.c.h.b16 %v70
    %v150 = vunpack.c.l.b16 %v71
    %v151 = vunpack.c.h.b16 %v71
    %v152 = vunpack.c.l.b16 %v72
    %v153 = vunpack.c.h.b16 %v72
    %v154 = vunpack.c.l.b16 %v73
    %v155 = vunpack.c.h.b16 %v73
    %v156 = vunpack.c.l.b16 %v74
    %v157 = vunpack.c.h.b16 %v74
    %v158 = vunpack.c.l.b16 %v75
    %v159 = vunpack.c.h.b16 %v75
    %v160 = vunpack.c.l.b16 %v76
    %v161 = vunpack.c.h.b16 %v76
    %v162 = vunpack.c.l.b16 %v77
    %v163 = vunpack.c.h.b16 %v77
    %v164 = vunpack.c.l.b16 %v78
    %v165 = vunpack.c.h.b16 %v78
    %v166 = vunpack.c.l.b16 %v79
    %v167 = vunpack.c.h.b16 %v79
    %v168 = vunpack.c.l.b16 %v80
    %v169 = vunpack.c.h.b16 %v80
    %v170 = vunpack.c.l.b16 %v81
    %v171 = vunpack.c.h.b16 %v81
    %v172 = vunpack.c.l.b16 %v82
    %v173 = vunpack.c.h.b16 %v82
    %v174 = vunpack.c.l.b16 %v83
    %v175 = vunpack.c.h.b16 %v83
    %v176 = vunpack.c.l.b16 %v84
    %v177 = vunpack.c.h.b16 %v84
    %v178 = vunpack.c.l.b16 %v85
    %v179 = vunpack.c.h.b16 %v85
    %v180 = vunpack.c.l.b16 %v86
    %v181 = vunpack.c.h.b16 %v86
    %v182 = vunpack.c.l.b16 %v87
    %v183 = vunpack.c.h.b16 %v87
    %v184 = vpack.c.b16 %v124, %v120
    %v185 = vpack.c.b16 %v125, %v121
    %v186 = vpack.c.b16 %v126, %v122
    %v187 = vpack.c.b16 %v127, %v123
    %v188 = vpack.c.b16 %v132, %v128
    %v189 = vpack.c.b16 %v133, %v129
    %v190 = vpack.c.b16 %v134, %v130
    %v191 = vpack.c.b16 %v135, %v131
    %v192 = vpack.c.b16 %v140, %v136
    %v193 = vpack.c.b16 %v141, %v137
    %v194 = vpack.c.b16 %v142, %v138
    %v195 = vpack.c.b16 %v143, %v139
    %v196 = vpack.c.b16 %v148, %v144
    %v197 = vpack.c.b16 %v149, %v145
    %v198 = vpack.c.b16 %v150, %v146
    %v199 = vpack.c.b16 %v151, %v147
    %v200 = vpack.c.b16 %v156, %v152
    %v201 = vpack.c.b16 %v157, %v153
    %v202 = vpack.c.b16 %v158, %v154
    %v203 = vpack.c.b16 %v159, %v155
    %v204 = vpack.c.b16 %v164, %v160
    %v205 = vpack.c.b16 %v165, %v161
    %v206 = vpack.c.b16 %v166, %v162
    %v207 = vpack.c.b16 %v167, %v163
    %v208 = vpack.c.b16 %v172, %v168
    %v209 = vpack.c.b16 %v173, %v169
    %v210 = vpack.c.b16 %v174, %v170
    %v211 = vpack.c.b16 %v175, %v171
    %v212 = vpack.c.b16 %v180, %v176
    %v213 = vpack.c.b16 %v181, %v177
    %v214 = vpack.c.b16 %v182, %v178
    %v215 = vpack.c.b16 %v183, %v179
    %248 = vmatprep.subr.bf16.mxu0 %v213
    %249 = vmatpush1.bf16.msra.mxu0 %v212
    %250 = vmatprep.subr.bf16.mxu0 %v209
    %251 = vmatpush1.bf16.msra.mxu0 %v208
    %252 = vmatprep.subr.bf16.mxu0 %v205
    %253 = vmatpush1.bf16.msra.mxu0 %v204
    %254 = vmatprep.subr.bf16.mxu0 %v201
    %255 = vmatpush1.bf16.msra.mxu0 %v200
    %256 = vmatprep.subr.bf16.mxu0 %v197
    %257 = vmatpush1.bf16.msra.mxu0 %v196
    %258 = vmatprep.subr.bf16.mxu0 %v193
    %259 = vmatpush1.bf16.msra.mxu0 %v192
    %260 = vmatprep.subr.bf16.mxu0 %v189
    %261 = vmatpush1.bf16.msra.mxu0 %v188
    %262 = vmatprep.subr.bf16.mxu0 %v185
    %263 = vmatpush1.bf16.msra.mxu0 %v184
    %264 = vmatprep.subr.bf16.mxu0 0
    %265 = vmatpush2.bf16.msra.mxu0 0
    %266 = vmatprep.subr.bf16.mxu0 0
    %267 = vmatpush2.bf16.msra.mxu0 0
    %268 = vmatprep.subr.bf16.mxu0 0
    %269 = vmatpush2.bf16.msra.mxu0 0
    %270 = vmatprep.subr.bf16.mxu0 0
    %271 = vmatpush2.bf16.msra.mxu0 0
    %272 = vmatprep.subr.bf16.mxu0 0
    %273 = vmatpush2.bf16.msra.mxu0 0
    %274 = vmatprep.subr.bf16.mxu0 0
    %275 = vmatpush2.bf16.msra.mxu0 0
    %276 = vmatprep.subr.bf16.mxu0 0
    %277 = vmatpush2.bf16.msra.mxu0 0
    %278 = vmatprep.subr.bf16.mxu0 0
    %279 = vmatpush2.bf16.msra.mxu0 0
    %280 = vmatprep.mubr.bf16.mxu0 0
    %281 = vmatmul.mubr.bf16.gmra.mxu0 %v55
    %v282 = vpop.f32.mrf.mxu0
    %v283 = vadd.f32 0.0, %v282
    %v284 = vpop.f32.mrf.mxu0
    %v285 = vadd.f32 0.0, %v284
    %v286 = vpop.f32.mrf.mxu0
    %v287 = vpop.f32.mrf.mxu0
    %288 = vdwg.mxu0
    %289 = vmatprep.subr.bf16.mxu0 %v215
    %290 = vmatpush1.bf16.msra.mxu0 %v214
    %291 = vmatprep.subr.bf16.mxu0 %v211
    %292 = vmatpush1.bf16.msra.mxu0 %v210
    %293 = vmatprep.subr.bf16.mxu0 %v207
    %294 = vmatpush1.bf16.msra.mxu0 %v206
    %295 = vmatprep.subr.bf16.mxu0 %v203
    %296 = vmatpush1.bf16.msra.mxu0 %v202
    %297 = vmatprep.subr.bf16.mxu0 %v199
    %298 = vmatpush1.bf16.msra.mxu0 %v198
    %299 = vmatprep.subr.bf16.mxu0 %v195
    %300 = vmatpush1.bf16.msra.mxu0 %v194
    %301 = vmatprep.subr.bf16.mxu0 %v191
    %302 = vmatpush1.bf16.msra.mxu0 %v190
    %303 = vmatprep.subr.bf16.mxu0 %v187
    %304 = vmatpush1.bf16.msra.mxu0 %v186
    %305 = vmatprep.subr.bf16.mxu0 0
    %306 = vmatpush2.bf16.msra.mxu0 0
    %307 = vmatprep.subr.bf16.mxu0 0
    %308 = vmatpush2.bf16.msra.mxu0 0
    %309 = vmatprep.subr.bf16.mxu0 0
    %310 = vmatpush2.bf16.msra.mxu0 0
    %311 = vmatprep.subr.bf16.mxu0 0
    %312 = vmatpush2.bf16.msra.mxu0 0
    %313 = vmatprep.subr.bf16.mxu0 0
    %314 = vmatpush2.bf16.msra.mxu0 0
    %315 = vmatprep.subr.bf16.mxu0 0
    %316 = vmatpush2.bf16.msra.mxu0 0
    %317 = vmatprep.subr.bf16.mxu0 0
    %318 = vmatpush2.bf16.msra.mxu0 0
    %319 = vmatprep.subr.bf16.mxu0 0
    %320 = vmatpush2.bf16.msra.mxu0 0
    %321 = vmatprep.mubr.bf16.mxu0 0
    %322 = vmatmul.mubr.bf16.gmra.mxu0 %v55
    %v323 = vpop.f32.mrf.mxu0
    %v324 = vadd.f32 0.0, %v323
    %v325 = vpop.f32.mrf.mxu0
    %v326 = vadd.f32 0.0, %v325
    %v327 = vpop.f32.mrf.mxu0
    %v328 = vpop.f32.mrf.mxu0
    %329 = vdwg.mxu0
    %v330 = vmax.f32 %v283, 0.0
    %v331 = vmax.f32 %v285, 0.0
    %v332 = vmax.f32 %v324, 0.0
    %v333 = vmax.f32 %v326, 0.0
    %v334 = vmax.f32 %v330, %v331
    %v335 = vmax.f32 %v332, %v333
    %v336 = vmax.f32 %v334, %v335
    %v337 = vpack.c.bf16 %v336, %v336
    %v338 = vld [vmem:[#allocation7] sm:$0xf]
    %v339 = vld [vmem:[#allocation7 + $0x4] sm:$0xf]
    %v340 = vld [vmem:[#allocation7 + $0x8] sm:$0xf]
    %v341 = vld [vmem:[#allocation7 + $0xc] sm:$0xf]
    %v342 = vld [vmem:[#allocation7 + $0x10] sm:$0xf]
    %v343 = vld [vmem:[#allocation7 + $0x14] sm:$0xf]
    %v344 = vld [vmem:[#allocation7 + $0x18] sm:$0xf]
    %v345 = vld [vmem:[#allocation7 + $0x1c] sm:$0xf]
    %v346 = vld [vmem:[#allocation7 + $0x20] sm:$0xf]
    %v347 = vld [vmem:[#allocation7 + $0x24] sm:$0xf]
    %v348 = vld [vmem:[#allocation7 + $0x28] sm:$0xf]
    %v349 = vld [vmem:[#allocation7 + $0x2c] sm:$0xf]
    %v350 = vld [vmem:[#allocation7 + $0x30] sm:$0xf]
    %v351 = vld [vmem:[#allocation7 + $0x34] sm:$0xf]
    %v352 = vld [vmem:[#allocation7 + $0x38] sm:$0xf]
    %v353 = vld [vmem:[#allocation7 + $0x3c] sm:$0xf]
    %v370 = vunpack.c.l.b16 %v338
    %v371 = vunpack.c.l.b16 %v339
    %v372 = vunpack.c.l.b16 %v340
    %v373 = vunpack.c.l.b16 %v341
    %v374 = vunpack.c.l.b16 %v342
    %v375 = vunpack.c.l.b16 %v343
    %v376 = vunpack.c.l.b16 %v344
    %v377 = vunpack.c.l.b16 %v345
    %v378 = vunpack.c.l.b16 %v346
    %v379 = vunpack.c.l.b16 %v347
    %v380 = vunpack.c.l.b16 %v348
    %v381 = vunpack.c.l.b16 %v349
    %v382 = vunpack.c.l.b16 %v350
    %v383 = vunpack.c.l.b16 %v351
    %v384 = vunpack.c.l.b16 %v352
    %v385 = vunpack.c.l.b16 %v353
    %v386 = vpack.c.b16 %v371, %v370
    %v387 = vpack.c.b16 %v373, %v372
    %v388 = vpack.c.b16 %v375, %v374
    %v389 = vpack.c.b16 %v377, %v376
    %v390 = vpack.c.b16 %v379, %v378
    %v391 = vpack.c.b16 %v381, %v380
    %v392 = vpack.c.b16 %v383, %v382
    %v393 = vpack.c.b16 %v385, %v384
    %402 = vmatprep.subr.bf16.mxu0 0
    %403 = vmatpush1.bf16.msra.mxu0 %v393
    %404 = vmatprep.subr.bf16.mxu0 0
    %405 = vmatpush1.bf16.msra.mxu0 %v392
    %406 = vmatprep.subr.bf16.mxu0 0
    %407 = vmatpush1.bf16.msra.mxu0 %v391
    %408 = vmatprep.subr.bf16.mxu0 0
    %409 = vmatpush1.bf16.msra.mxu0 %v390
    %410 = vmatprep.subr.bf16.mxu0 0
    %411 = vmatpush1.bf16.msra.mxu0 %v389
    %412 = vmatprep.subr.bf16.mxu0 0
    %413 = vmatpush1.bf16.msra.mxu0 %v388
    %414 = vmatprep.subr.bf16.mxu0 0
    %415 = vmatpush1.bf16.msra.mxu0 %v387
    %416 = vmatprep.subr.bf16.mxu0 0
    %417 = vmatpush1.bf16.msra.mxu0 %v386
    %418 = vmatprep.subr.bf16.mxu0 0
    %419 = vmatpush2.bf16.msra.mxu0 0
    %420 = vmatprep.subr.bf16.mxu0 0
    %421 = vmatpush2.bf16.msra.mxu0 0
    %422 = vmatprep.subr.bf16.mxu0 0
    %423 = vmatpush2.bf16.msra.mxu0 0
    %424 = vmatprep.subr.bf16.mxu0 0
    %425 = vmatpush2.bf16.msra.mxu0 0
    %426 = vmatprep.subr.bf16.mxu0 0
    %427 = vmatpush2.bf16.msra.mxu0 0
    %428 = vmatprep.subr.bf16.mxu0 0
    %429 = vmatpush2.bf16.msra.mxu0 0
    %430 = vmatprep.subr.bf16.mxu0 0
    %431 = vmatpush2.bf16.msra.mxu0 0
    %432 = vmatprep.subr.bf16.mxu0 0
    %433 = vmatpush2.bf16.msra.mxu0 0
    %434 = vmatprep.mubr.bf16.mxu0 0
    %435 = vmatmul.mubr.bf16.gmra.mxu0 %v337
    %v436 = vpop.f32.mrf.mxu0
    %v437 = vadd.f32 0.0, %v436
    %v438 = vpop.f32.mrf.mxu0
    %v439 = vpop.f32.mrf.mxu0
    %v440 = vpop.f32.mrf.mxu0
    %441 = vdwg.mxu0
    %v442 = vmax.f32 %v437, 0.0
    %v443 = vpack.c.bf16 %v442, %v442
    %s444 = scalar_lea.vmem [#allocation7], 64
    %v445 = vld [vmem:[%s444] sm:$0xf]
    %v446 = vld [vmem:[%s444 + $0x4] sm:$0xf]
    %v447 = vld [vmem:[%s444 + $0x8] sm:$0xf]
    %v448 = vld [vmem:[%s444 + $0xc] sm:$0xf]
    %v449 = vld [vmem:[%s444 + $0x10] sm:$0xf]
    %v450 = vld [vmem:[%s444 + $0x14] sm:$0xf]
    %v451 = vld [vmem:[%s444 + $0x18] sm:$0xf]
    %v452 = vld [vmem:[%s444 + $0x1c] sm:$0xf]
    %v453 = vld [vmem:[%s444 + $0x20] sm:$0xf]
    %v454 = vld [vmem:[%s444 + $0x24] sm:$0xf]
    %v455 = vld [vmem:[%s444 + $0x28] sm:$0xf]
    %v456 = vld [vmem:[%s444 + $0x2c] sm:$0xf]
    %v457 = vld [vmem:[%s444 + $0x30] sm:$0xf]
    %v458 = vld [vmem:[%s444 + $0x34] sm:$0xf]
    %v459 = vld [vmem:[%s444 + $0x38] sm:$0xf]
    %v460 = vld [vmem:[%s444 + $0x3c] sm:$0xf]
    %v477 = vunpack.c.l.b16 %v445
    %v478 = vunpack.c.l.b16 %v446
    %v479 = vunpack.c.l.b16 %v447
    %v480 = vunpack.c.l.b16 %v448
    %v481 = vunpack.c.l.b16 %v449
    %v482 = vunpack.c.l.b16 %v450
    %v483 = vunpack.c.l.b16 %v451
    %v484 = vunpack.c.l.b16 %v452
    %v485 = vunpack.c.l.b16 %v453
    %v486 = vunpack.c.l.b16 %v454
    %v487 = vunpack.c.l.b16 %v455
    %v488 = vunpack.c.l.b16 %v456
    %v489 = vunpack.c.l.b16 %v457
    %v490 = vunpack.c.l.b16 %v458
    %v491 = vunpack.c.l.b16 %v459
    %v492 = vunpack.c.l.b16 %v460
    %v493 = vpack.c.b16 %v478, %v477
    %v494 = vpack.c.b16 %v480, %v479
    %v495 = vpack.c.b16 %v482, %v481
    %v496 = vpack.c.b16 %v484, %v483
    %v497 = vpack.c.b16 %v486, %v485
    %v498 = vpack.c.b16 %v488, %v487
    %v499 = vpack.c.b16 %v490, %v489
    %v500 = vpack.c.b16 %v492, %v491
    %509 = vmatprep.subr.bf16.mxu0 0
    %510 = vmatpush1.bf16.msra.mxu0 %v500
    %511 = vmatprep.subr.bf16.mxu0 0
    %512 = vmatpush1.bf16.msra.mxu0 %v499
    %513 = vmatprep.subr.bf16.mxu0 0
    %514 = vmatpush1.bf16.msra.mxu0 %v498
    %515 = vmatprep.subr.bf16.mxu0 0
    %516 = vmatpush1.bf16.msra.mxu0 %v497
    %517 = vmatprep.subr.bf16.mxu0 0
    %518 = vmatpush1.bf16.msra.mxu0 %v496
    %519 = vmatprep.subr.bf16.mxu0 0
    %520 = vmatpush1.bf16.msra.mxu0 %v495
    %521 = vmatprep.subr.bf16.mxu0 0
    %522 = vmatpush1.bf16.msra.mxu0 %v494
    %523 = vmatprep.subr.bf16.mxu0 0
    %524 = vmatpush1.bf16.msra.mxu0 %v493
    %525 = vmatprep.subr.bf16.mxu0 0
    %526 = vmatpush2.bf16.msra.mxu0 0
    %527 = vmatprep.subr.bf16.mxu0 0
    %528 = vmatpush2.bf16.msra.mxu0 0
    %529 = vmatprep.subr.bf16.mxu0 0
    %530 = vmatpush2.bf16.msra.mxu0 0
    %531 = vmatprep.subr.bf16.mxu0 0
    %532 = vmatpush2.bf16.msra.mxu0 0
    %533 = vmatprep.subr.bf16.mxu0 0
    %534 = vmatpush2.bf16.msra.mxu0 0
    %535 = vmatprep.subr.bf16.mxu0 0
    %536 = vmatpush2.bf16.msra.mxu0 0
    %537 = vmatprep.subr.bf16.mxu0 0
    %538 = vmatpush2.bf16.msra.mxu0 0
    %539 = vmatprep.subr.bf16.mxu0 0
    %540 = vmatpush2.bf16.msra.mxu0 0
    %541 = vmatprep.mubr.bf16.mxu0 0
    %542 = vmatmul.mubr.bf16.gmra.mxu0 %v443
    %v543 = vpop.f32.mrf.mxu0
    %v544 = vadd.f32 0.0, %v543
    %v545 = vpop.f32.mrf.mxu0
    %v546 = vpop.f32.mrf.mxu0
    %v547 = vpop.f32.mrf.mxu0
    %548 = vdwg.mxu0
    %v549 = vmax.f32 %v544, 0.0
    %v550 = vpack.c.bf16 %v549, %v549
    %s551 = scalar_lea.vmem [#allocation7], 128
    %v552 = vld [vmem:[%s551] sm:$0xf]
    %v553 = vld [vmem:[%s551 + $0x4] sm:$0xf]
    %v554 = vld [vmem:[%s551 + $0x8] sm:$0xf]
    %v555 = vld [vmem:[%s551 + $0xc] sm:$0xf]
    %v556 = vld [vmem:[%s551 + $0x10] sm:$0xf]
    %v557 = vld [vmem:[%s551 + $0x14] sm:$0xf]
    %v558 = vld [vmem:[%s551 + $0x18] sm:$0xf]
    %v559 = vld [vmem:[%s551 + $0x1c] sm:$0xf]
    %v560 = vld [vmem:[%s551 + $0x20] sm:$0xf]
    %v561 = vld [vmem:[%s551 + $0x24] sm:$0xf]
    %v562 = vld [vmem:[%s551 + $0x28] sm:$0xf]
    %v563 = vld [vmem:[%s551 + $0x2c] sm:$0xf]
    %v564 = vld [vmem:[%s551 + $0x30] sm:$0xf]
    %v565 = vld [vmem:[%s551 + $0x34] sm:$0xf]
    %v566 = vld [vmem:[%s551 + $0x38] sm:$0xf]
    %v567 = vld [vmem:[%s551 + $0x3c] sm:$0xf]
    %v584 = vunpack.c.l.b16 %v552
    %v585 = vunpack.c.l.b16 %v553
    %v586 = vunpack.c.l.b16 %v554
    %v587 = vunpack.c.l.b16 %v555
    %v588 = vunpack.c.l.b16 %v556
    %v589 = vunpack.c.l.b16 %v557
    %v590 = vunpack.c.l.b16 %v558
    %v591 = vunpack.c.l.b16 %v559
    %v592 = vunpack.c.l.b16 %v560
    %v593 = vunpack.c.l.b16 %v561
    %v594 = vunpack.c.l.b16 %v562
    %v595 = vunpack.c.l.b16 %v563
    %v596 = vunpack.c.l.b16 %v564
    %v597 = vunpack.c.l.b16 %v565
    %v598 = vunpack.c.l.b16 %v566
    %v599 = vunpack.c.l.b16 %v567
    %v600 = vpack.c.b16 %v585, %v584
    %v601 = vpack.c.b16 %v587, %v586
    %v602 = vpack.c.b16 %v589, %v588
    %v603 = vpack.c.b16 %v591, %v590
    %v604 = vpack.c.b16 %v593, %v592
    %v605 = vpack.c.b16 %v595, %v594
    %v606 = vpack.c.b16 %v597, %v596
    %v607 = vpack.c.b16 %v599, %v598
    %616 = vmatprep.subr.bf16.mxu0 0
    %617 = vmatpush1.bf16.msra.mxu0 %v607
    %618 = vmatprep.subr.bf16.mxu0 0
    %619 = vmatpush1.bf16.msra.mxu0 %v606
    %620 = vmatprep.subr.bf16.mxu0 0
    %621 = vmatpush1.bf16.msra.mxu0 %v605
    %622 = vmatprep.subr.bf16.mxu0 0
    %623 = vmatpush1.bf16.msra.mxu0 %v604
    %624 = vmatprep.subr.bf16.mxu0 0
    %625 = vmatpush1.bf16.msra.mxu0 %v603
    %626 = vmatprep.subr.bf16.mxu0 0
    %627 = vmatpush1.bf16.msra.mxu0 %v602
    %628 = vmatprep.subr.bf16.mxu0 0
    %629 = vmatpush1.bf16.msra.mxu0 %v601
    %630 = vmatprep.subr.bf16.mxu0 0
    %631 = vmatpush1.bf16.msra.mxu0 %v600
    %632 = vmatprep.subr.bf16.mxu0 0
    %633 = vmatpush2.bf16.msra.mxu0 0
    %634 = vmatprep.subr.bf16.mxu0 0
    %635 = vmatpush2.bf16.msra.mxu0 0
    %636 = vmatprep.subr.bf16.mxu0 0
    %637 = vmatpush2.bf16.msra.mxu0 0
    %638 = vmatprep.subr.bf16.mxu0 0
    %639 = vmatpush2.bf16.msra.mxu0 0
    %640 = vmatprep.subr.bf16.mxu0 0
    %641 = vmatpush2.bf16.msra.mxu0 0
    %642 = vmatprep.subr.bf16.mxu0 0
    %643 = vmatpush2.bf16.msra.mxu0 0
    %644 = vmatprep.subr.bf16.mxu0 0
    %645 = vmatpush2.bf16.msra.mxu0 0
    %646 = vmatprep.subr.bf16.mxu0 0
    %647 = vmatpush2.bf16.msra.mxu0 0
    %648 = vmatprep.mubr.bf16.mxu0 0
    %649 = vmatmul.mubr.bf16.gmra.mxu0 %v550
    %v650 = vpop.f32.mrf.mxu0
    %v651 = vadd.f32 0.0, %v650
    %v652 = vpop.f32.mrf.mxu0
    %v653 = vpop.f32.mrf.mxu0
    %v654 = vpop.f32.mrf.mxu0
    %655 = vdwg.mxu0
    %656 = vmax.xlane.f32.xlu0 %v651
    %v657 = vpop.xlane.xlu0 %656
    %v658 = vsub.f32 %v651, %v657
    %v659 = vmul.f32 %v658, 1.442695
    %v660 = vpow.pop %v659
    %661 = vadd.xlane.f32.xlu0 %v660
    %v662 = vpop.xlane.xlu0 %661
    %v663 = vlog2.pop %v662
    %v664 = vmul.f32 %v663, 0.6931472
    %v665 = vadd.f32 %v657, %v664
    %v666 = vsub.f32 %v651, %v665
    %667 = vst [vmem:[#allocation8] sm:$0xff] %v666
    // Predicated region
    $region26: #{tpu_custom_call.1} parent=1 // pred_check
      _
    $region27: #{tpu_custom_call.1} parent=1 // pred_check_branch
      %669 = sbr.rel (0) target = $region29
    $region28: #{tpu_custom_call.1} parent=1 // pred_region
      %s671 = ssub.s32 128, 128
      %672 = vsyncadd [#allocation4], %s671
      %s674 = sshll.u32 [#allocation8], 4
      %s675 = int_to_ptr.vmem [resolvable:$true] %s674
      %677 = dma.vmem_to_hbm [thread:$0]  %s675, 128, %s3, [#allocation4]
    $region29: #{tpu_custom_call.1} parent=1 // pred_fallthru
      _
    // Predicated region
    $region30: #{tpu_custom_call.1} parent=1 // pred_check
      _
    $region31: #{tpu_custom_call.1} parent=1 // pred_check_branch
      %679 = sbr.rel (0) target = $region33
    $region32: #{tpu_custom_call.1} parent=1 // pred_region
      %680 = dma.done [#allocation4], 128
    $region33: #{tpu_custom_call.1} parent=1 // pred_fallthru
      _
    %681 = vsyncpa [#allocation3], 1
    %682 = vsyncpa [#allocation6], 1
    %683 = vsyncpa [#allocation4], 1

</llo_original>
